<compile_context>
chip_gen: v7x
topology: tpu7x:2x2x1
jax: 0.10.0
libtpu: 0.0.40
codegen_flags: <defaults>
</compile_context>

<pallas_src>
import jax
import jax.numpy as jnp
from jax.experimental import pallas as pl
from jax.experimental.pallas import tpu as pltpu

LANE = 128                 # vreg lane width (last dim of the lane-dense slab)
SUBLANE = 8                # f32 sublane granularity
DEF_BLOCK_ROWS = 4096      # 4096 * 128 * 4 B = 2 MiB per block
SMALL_N_THRESHOLD = 32768  # below this, a fused XLA elementwise op is faster


def linear_fma_kernel(w_ref, b_ref, x_ref, o_ref):
    # w_ref, b_ref: (1,) f32 scalars in SMEM (scalar path, no padded VMEM tile).
    # x_ref, o_ref: (tm, 128) lane-dense tiles in VMEM.
    w = w_ref[0]
    b = b_ref[0]
    # Pure VPU fused multiply-add; compute in f32, cast explicitly on store.
    o_ref[...] = (x_ref[...].astype(jnp.float32) * w + b).astype(o_ref.dtype)


def _round_up(v, m):
    return ((v + m - 1) // m) * m


def _pallas_fma(x2, w_s, b_s, tm):
    """x2: (rows, 128) lane-dense slab; returns x2 * w + b, same shape/dtype."""
    rows = x2.shape[0]
    grid = (pl.cdiv(rows, tm),)          # ragged final block is masked by Pallas
    nbytes = 2 * rows * LANE * 4         # read + write of the slab
    return pl.pallas_call(
        linear_fma_kernel,
        out_shape=jax.ShapeDtypeStruct((rows, LANE), x2.dtype),
        grid=grid,
        in_specs=[
            pl.BlockSpec(memory_space=pltpu.MemorySpace.SMEM),   # weight scalar
            pl.BlockSpec(memory_space=pltpu.MemorySpace.SMEM),   # bias scalar
            pl.BlockSpec((tm, LANE), lambda i: (i, 0)),          # x rows block
        ],
        out_specs=pl.BlockSpec((tm, LANE), lambda i: (i, 0)),
        compiler_params=pltpu.CompilerParams(
            dimension_semantics=("parallel",)),
        cost_estimate=pl.CostEstimate(
            flops=2 * rows * LANE,
            transcendentals=0,
            bytes_accessed=nbytes),
    )(w_s, b_s, x2)


def linear_regression_forward(x, weight, bias, *,
                              block_rows=DEF_BLOCK_ROWS,
                              force_pallas=False):
    """x: (N, 1), weight: (1, 1), bias: (1,) -> (N, 1)   (y = x * w + b)."""
    n = x.shape[0]
    out_dtype = x.dtype
    w_s = weight.reshape(1).astype(jnp.float32)
    b_s = bias.reshape(1).astype(jnp.float32)

    # Edge case: empty batch.
    if n == 0:
        return jnp.zeros((0, 1), out_dtype)

    # Small-N dispatch: launch/DMA overhead would dominate the Pallas path.
    if (not force_pallas) and n < SMALL_N_THRESHOLD:
        y = x.astype(jnp.float32) * w_s[0] + b_s[0]
        return y.astype(out_dtype)

    xf = x.reshape(-1)
    if n % LANE == 0:
        # Fast path: no pad, no slice; contiguous reshapes are free.
        rows = n // LANE
        x2 = xf.reshape(rows, LANE)
    else:
        # Pad only up to a sublane-aligned slab (multiple of 8*128 elements),
        # not up to a multiple of the block size.
        rows = _round_up(pl.cdiv(n, LANE), SUBLANE)
        x2 = jnp.pad(xf, (0, rows * LANE - n)).reshape(rows, LANE)

    # Block rows: as large as allowed, sublane-aligned, capped by the slab.
    tm = min(block_rows, _round_up(rows, SUBLANE))

    out2 = _pallas_fma(x2, w_s, b_s, tm)

    if n % LANE == 0:
        return out2.reshape(n, 1)
    # Padded tail evaluates to b (0*w + b) and is discarded here.
    return out2.reshape(-1)[:n].reshape(n, 1)


if __name__ == "__main__":
    key = jax.random.PRNGKey(0)
    kx, kw, kb, kx2, kx3 = jax.random.split(key, 5)

    # Deterministic parameters (mimics PyTorch's U(-1, 1) bound for fan_in=1).
    weight = jax.random.uniform(kw, (1, 1), minval=-1.0, maxval=1.0,
                                dtype=jnp.float32)
    bias = jax.random.uniform(kb, (1,), minval=-1.0, maxval=1.0,
                              dtype=jnp.float32)

    # 1) Tiny batch (N=8), consistent with nn.Linear(1, 1): uses the fused
    #    jnp fallback (kernel would be pure overhead at this size).
    x_small = jax.random.normal(kx, (8, 1), dtype=jnp.float32)
    out_small = jax.block_until_ready(
        linear_regression_forward(x_small, weight, bias))
    ref_small = x_small @ weight.T + bias
    assert out_small.shape == (8, 1)
    assert jnp.allclose(out_small, ref_small, atol=1e-6, rtol=1e-6)

    # 2) Pallas path, lane-aligned fast path (N multiple of 128, no pad/slice).
    x_big = jax.random.normal(kx2, (2048, 1), dtype=jnp.float32)
    out_big = jax.block_until_ready(
        linear_regression_forward(x_big, weight, bias, force_pallas=True))
    ref_big = x_big @ weight.T + bias
    assert out_big.shape == (2048, 1)
    assert jnp.allclose(out_big, ref_big, atol=1e-6, rtol=1e-6)

    # 3) Pallas path, ragged tail (N not a multiple of 128 -> minimal pad).
    x_rag = jax.random.normal(kx3, (1000, 1), dtype=jnp.float32)
    out_rag = jax.block_until_ready(
        linear_regression_forward(x_rag, weight, bias, force_pallas=True))
    ref_rag = x_rag @ weight.T + bias
    assert out_rag.shape == (1000, 1)
    assert jnp.allclose(out_rag, ref_rag, atol=1e-6, rtol=1e-6)

    print("KERNEL_OK")
</pallas_src>

<mosaic_0001>
module attributes {stable_mosaic.version = 11 : i64} {
  func.func @linear_fma_kernel(%arg0: i32, %arg1: memref<1xf32, #tpu.memory_space<smem>>, %arg2: memref<1xf32, #tpu.memory_space<smem>>, %arg3: memref<16x128xf32, #tpu.memory_space<vmem>>, %arg4: memref<16x128xf32, #tpu.memory_space<vmem>>) attributes {dimension_semantics = [#tpu.dimension_semantics<parallel>], iteration_bounds = array<i64: 1>, scalar_prefetch = 0 : i64, scratch_operands = 0 : i64, tpu.core_type = #tpu.core_type<tc>, window_params = [{transform_indices = @transform_0, window_bounds = array<i64: 1>}, {transform_indices = @transform_1, window_bounds = array<i64: 1>}, {transform_indices = @transform_2, window_bounds = array<i64: 16, 128>}, {transform_indices = @transform_3, window_bounds = array<i64: 16, 128>}]} {
    %c0 = arith.constant 0 : index
    %0 = memref.load %arg1[%c0] : memref<1xf32, #tpu.memory_space<smem>>
    %c0_0 = arith.constant 0 : index
    %1 = memref.load %arg2[%c0_0] : memref<1xf32, #tpu.memory_space<smem>>
    %c0_1 = arith.constant 0 : index
    %c0_2 = arith.constant 0 : index
    %2 = vector.load %arg3[%c0_1, %c0_2] : memref<16x128xf32, #tpu.memory_space<vmem>>, vector<16x128xf32>
    %3 = vector.broadcast %0 : f32 to vector<16x128xf32>
    %4 = arith.mulf %2, %3 : vector<16x128xf32>
    %5 = vector.broadcast %1 : f32 to vector<16x128xf32>
    %6 = arith.addf %4, %5 : vector<16x128xf32>
    %c0_3 = arith.constant 0 : index
    %c0_4 = arith.constant 0 : index
    %7 = vector.load %arg4[%c0_3, %c0_4] : memref<16x128xf32, #tpu.memory_space<vmem>>, vector<16x128xf32>
    tpu.vector_store %arg4[%c0_3, %c0_4], %6 {strides = array<i32>} : memref<16x128xf32, #tpu.memory_space<vmem>>, vector<16x128xf32>,
    return
  }
  func.func @transform_0(%arg0: i32) -> i32 {
    %c0_i32 = arith.constant 0 : i32
    %c0_i32_0 = arith.constant 0 : i32
    return %c0_i32 : i32
  }
  func.func @transform_1(%arg0: i32) -> i32 {
    %c0_i32 = arith.constant 0 : i32
    %c0_i32_0 = arith.constant 0 : i32
    return %c0_i32 : i32
  }
  func.func @transform_2(%arg0: i32) -> (i32, i32) {
    %c0_i32 = arith.constant 0 : i32
    %c0_i32_0 = arith.constant 0 : i32
    return %arg0, %c0_i32 : i32, i32
  }
  func.func @transform_3(%arg0: i32) -> (i32, i32) {
    %c0_i32 = arith.constant 0 : i32
    %c0_i32_0 = arith.constant 0 : i32
    return %arg0, %c0_i32 : i32, i32
  }
}

</mosaic_0001>

<llo_original>
// kernel: tpu_custom_call.1
$region0: #{tpu_custom_call.1}
  #allocation0 [shape = 'u32[]', space=smem, size = 0x4, offset = 0x4, fixed_abs, tag = 'smem constant byte address 0x4 - core index']
  #allocation1 [shape = 'u32[144,128]{1,0:T(1,128)}', space=vmem, size = 0x12000, scoped, tag = 'internal scratch']
  #allocation2 [shape = 'f32[1]{0:T(128)S(6)}', space=smem, size = 0x200, scoped, tag = 'scoped memory for tpu_custom_call.1']
  #allocation3 [shape = 'f32[1]{0:T(128)S(6)}', space=smem, size = 0x200, scoped, tag = 'scoped memory for tpu_custom_call.1']
  %s0 = inlined_call_operand.<no memory space> [shape: f32[1], index: 0, kind: input, shape index: {}]
  %s1 = inlined_call_operand.<no memory space> [shape: f32[1], index: 1, kind: input, shape index: {}]
  %s2 = inlined_call_operand.hbm [shape: f32[16,128], index: 2, kind: input, shape index: {}]
  %s3 = inlined_call_operand.hbm [shape: f32[16,128], index: 3, kind: output, shape index: {}]
  %s4 = sld [smem:[#allocation0]]
  $region26: #{tpu_custom_call.1} parent=0
    _
  %s6 = ssub.s32 1, %s4
  %s7 = scalar_select 0, %s6, %s4
  %8 = sst [smem:[#allocation2]] %s0
  %9 = sst [smem:[#allocation3]] %s1
  $region1: #{tpu_custom_call.1} parent=0
    #allocation4 [shape = 'u8[8192]{0}', space=vmem, size = 0x2000, scoped, tag = 'input window, operand 2, single buffered']
    #allocation5 [shape = 's32[1]{0}', space=sflag, size = 0x4, scoped, tag = 'scoped memory for tpu_custom_call.1']
    #allocation6 [shape = 's32[1]{0}', space=sflag, size = 0x4, scoped, tag = 'scoped memory for tpu_custom_call.1']
    #allocation7 [shape = 'u8[8192]{0}', space=vmem, size = 0x2000, scoped, tag = 'output window, operand 0, single buffered']
    %10 = vsyncpa [#allocation5], 0
    %11 = vsyncpa [#allocation6], 0
    // Predicated region
    $region2: #{tpu_custom_call.1} parent=1 // pred_check
      _
    $region3: #{tpu_custom_call.1} parent=1 // pred_check_branch
      %13 = sbr.rel (0) target = $region5
    $region4: #{tpu_custom_call.1} parent=1 // pred_region
      _
    $region5: #{tpu_custom_call.1} parent=1 // pred_fallthru
      _
    // Predicated region
    $region6: #{tpu_custom_call.1} parent=1 // pred_check
      _
    $region7: #{tpu_custom_call.1} parent=1 // pred_check_branch
      %15 = sbr.rel (0) target = $region9
    $region8: #{tpu_custom_call.1} parent=1 // pred_region
      _
    $region9: #{tpu_custom_call.1} parent=1 // pred_fallthru
      _
    // Predicated region
    $region10: #{tpu_custom_call.1} parent=1 // pred_check
      _
    $region11: #{tpu_custom_call.1} parent=1 // pred_check_branch
      %17 = sbr.rel (0) target = $region13
    $region12: #{tpu_custom_call.1} parent=1 // pred_region
      %s19 = ssub.s32 256, 256
      %20 = vsyncadd [#allocation5], %s19
      %s21 = sshll.u32 [#allocation4], 4
      %s22 = int_to_ptr.vmem [resolvable:$true] %s21
      %27 = dma.hbm_to_vmem [thread:$0]  %s2, 256, %s22, [#allocation5], 128, 128, 8
    $region13: #{tpu_custom_call.1} parent=1 // pred_fallthru
      _
    // Predicated region
    $region14: #{tpu_custom_call.1} parent=1 // pred_check
      _
    $region15: #{tpu_custom_call.1} parent=1 // pred_check_branch
      %29 = sbr.rel (0) target = $region17
    $region16: #{tpu_custom_call.1} parent=1 // pred_region
      %30 = dma.done [#allocation5], 256
    $region17: #{tpu_custom_call.1} parent=1 // pred_fallthru
      _
    %s31 = sld [smem:[#allocation2]]
    %s32 = sld [smem:[#allocation3]]
    %v33 = vld [vmem:[#allocation4] sm:$0xff]
    %v34 = vld [vmem:[#allocation4 + $0x8] sm:$0xff]
    %v35 = vstv %s31
    %v36 = vmul.f32 %v33, %v35
    %v37 = vmul.f32 %v34, %v35
    %v38 = vstv %s32
    %v39 = vadd.f32 %v36, %v38
    %v40 = vadd.f32 %v37, %v38
    %41 = vst [vmem:[#allocation7] sm:$0xff] %v39
    %42 = vst [vmem:[#allocation7 + $0x8] sm:$0xff] %v40
    // Predicated region
    $region18: #{tpu_custom_call.1} parent=1 // pred_check
      _
    $region19: #{tpu_custom_call.1} parent=1 // pred_check_branch
      %44 = sbr.rel (0) target = $region21
    $region20: #{tpu_custom_call.1} parent=1 // pred_region
      %s46 = ssub.s32 256, 256
      %47 = vsyncadd [#allocation6], %s46
      %s48 = sshll.u32 [#allocation7], 4
      %s49 = int_to_ptr.vmem [resolvable:$true] %s48
      %54 = dma.vmem_to_hbm [thread:$0]  %s49, 256, %s3, [#allocation6], 128, 128, 8
    $region21: #{tpu_custom_call.1} parent=1 // pred_fallthru
      _
    // Predicated region
    $region22: #{tpu_custom_call.1} parent=1 // pred_check
      _
    $region23: #{tpu_custom_call.1} parent=1 // pred_check_branch
      %56 = sbr.rel (0) target = $region25
    $region24: #{tpu_custom_call.1} parent=1 // pred_region
      %57 = dma.done [#allocation6], 256
    $region25: #{tpu_custom_call.1} parent=1 // pred_fallthru
      _
    %58 = vsyncpa [#allocation5], 1
    %59 = vsyncpa [#allocation6], 1

</llo_original>
